<compile_context>
chip_gen: v5e
topology: v5e:2x2
jax: 0.10.0
libtpu: 0.0.40
codegen_flags: <defaults>
</compile_context>

<pallas_src>
import jax
import jax.numpy as jnp
from jax.experimental import pallas as pl
from jax.experimental.pallas import tpu as pltpu


def _round_up(v, m):
    return ((v + m - 1) // m) * m


def _vmem_capacity_bytes():
    """Per-core VMEM capacity; conservative 64 MiB (v7x per-TC) fallback."""
    try:
        cap = getattr(pltpu.get_tpu_info(), "vmem_capacity_bytes", None)
        if cap:
            return int(cap)
    except Exception:
        pass
    return 64 << 20


def acm_kernel(x_ref, bnd_ref, wconv_ref, bconv_ref, whead_ref, bhead_ref,
               emb_ref, head_ref):
    """One (batch, time-tile) step.

    x_ref:     (1, TM, D)    input features (f32 or bf16)
    bnd_ref:   (1, 1, 2, D)  halo rows: [x[tile_start-1], x[tile_end]] (0 at edges)
    wconv_ref: (3, D, D)     bf16 conv taps (reads x[t-1], x[t], x[t+1])
    bconv_ref: (1, D)        f32 conv bias
    whead_ref: (D, Wp)       bf16, cols [0:3]=att conv1x1, [3:3+C1]=cls, rest 0
    bhead_ref: (1, Wp)       f32 fused head bias (zero-padded)
    emb_ref:   (1, TM, D)    bf16 embedded features (post-ReLU)
    head_ref:  (1, TM, Wp)   f32 fused head logits
    """
    tm = x_ref.shape[1]
    f32 = jnp.float32

    xt = x_ref[0].astype(jnp.bfloat16)             # (TM, D)
    bnd = bnd_ref[0, 0].astype(jnp.bfloat16)       # (2, D)

    # Per-tap matmuls, f32 accumulation on the MXU.
    y_prev = jnp.dot(xt, wconv_ref[0], preferred_element_type=f32)   # x[j] -> out[j+1]
    y_self = jnp.dot(xt, wconv_ref[1], preferred_element_type=f32)   # x[j] -> out[j]
    y_next = jnp.dot(xt, wconv_ref[2], preferred_element_type=f32)   # x[j] -> out[j-1]
    # Halo contributions (previous tile's last row / next tile's first row).
    hb_prev = jnp.dot(bnd[0:1], wconv_ref[0], preferred_element_type=f32)  # (1, D)
    hb_next = jnp.dot(bnd[1:2], wconv_ref[2], preferred_element_type=f32)  # (1, D)

    # Shift neighbour contributions by one time step (sublane roll on the XLU)
    # and patch the tile-boundary rows from the halo; all elementwise in f32.
    row = jax.lax.broadcasted_iota(jnp.int32, (tm, 1), 0)
    from_prev = jnp.where(row == 0, hb_prev,
                          pltpu.roll(y_prev, shift=1, axis=0))
    from_next = jnp.where(row == tm - 1, hb_next,
                          pltpu.roll(y_next, shift=tm - 1, axis=0))

    emb = jnp.maximum(from_prev + y_self + from_next + bconv_ref[...], 0.0)
    emb_bf = emb.astype(jnp.bfloat16)
    emb_ref[0] = emb_bf

    # Fused att(3) + snippet_cls(C1) head: logits only (softmaxes in wrapper).
    head_ref[0] = (jnp.dot(emb_bf, whead_ref[...], preferred_element_type=f32)
                   + bhead_ref[...])


def acm_forward(x, params, *, ins_topk_seg=8, con_topk_seg=8, bak_topk_seg=8,
                tm=None):
    """x: (B, T, D) float32 input features (same layout as the PyTorch input)."""
    B, T, D = x.shape
    H = params["whead"].shape[-1]          # 3 + C1
    C1 = H - 3
    Wp = _round_up(H, 128)                 # lane-dense fused-head width

    # ---- tile size: large tiles for roofline, shrunk to fit this chip's VMEM.
    if tm is None:
        tm = 1024 if D <= 1024 else 512
    tm = max(16, min(_round_up(tm, 16), _round_up(T, 16)))   # multiple of 16

    pre_cast = D >= 1024                   # MXU-bound regime: pre-cast x to bf16
    in_bytes = 2 if pre_cast else 4
    wconv_bytes = 3 * D * D * 2
    whead_bytes = D * Wp * 2
    single_buf_weights = (wconv_bytes + whead_bytes) > (4 << 20)
    wbuf = 1 if single_buf_weights else 2

    vmem_cap = _vmem_capacity_bytes()

    def vmem_est(tm_):
        return (2 * tm_ * D * in_bytes                 # x tiles (double-buffered)
                + 4 * D * in_bytes                     # halo rows
                + wbuf * (wconv_bytes + whead_bytes)   # weights
                + 2 * (D + Wp) * 4                     # biases
                + 2 * (tm_ * D * 2 + tm_ * Wp * 4)     # outputs (double-buffered)
                + 6 * tm_ * D * 4                      # live f32 intermediates
                + (4 << 20))                           # compiler headroom

    while tm > 16 and vmem_est(tm) > int(vmem_cap * 0.85):
        tm = max(16, _round_up(tm // 2, 16))
    # TODO(synk): if even tm=16 does not fit (very large D), tile wconv over
    # output channels with a third grid axis instead of shrinking tm further.
    vmem_limit = int(min(max(vmem_est(tm), 16 << 20), int(vmem_cap * 0.85)))

    Tp = _round_up(T, tm)
    n_t = Tp // tm

    # ---- inputs: ONE padded copy of x plus tiny per-tile halo rows.
    xk = x.astype(jnp.bfloat16) if pre_cast else x
    x_pad = jnp.pad(xk, ((0, 0), (0, Tp - T), (0, 0)))
    zrow = jnp.zeros((B, 1, D), x_pad.dtype)
    prev_rows = jnp.concatenate(
        [zrow, x_pad[:, tm - 1::tm, :][:, :n_t - 1]], axis=1)          # (B, n_t, D)
    next_rows = jnp.concatenate([x_pad[:, tm::tm, :], zrow], axis=1)   # (B, n_t, D)
    bnd = jnp.stack([prev_rows, next_rows], axis=2)                    # (B, n_t, 2, D)

    # Fused head weights padded to a 128-lane boundary (zero columns are free).
    whead = jnp.pad(params["whead"], ((0, 0), (0, Wp - H)))
    bhead = jnp.pad(params["bhead"], ((0, 0), (0, Wp - H)))

    def const_spec(shape):
        idx = lambda b, t, _n=len(shape): (0,) * _n
        if single_buf_weights:
            # Constant operands: no double-buffering (VMEM headroom on v7x).
            return pl.BlockSpec(shape, idx, pipeline_mode=pl.Buffered(buffer_count=1))
        return pl.BlockSpec(shape, idx)

    in_specs = [
        pl.BlockSpec((1, tm, D), lambda b, t: (b, t, 0)),
        pl.BlockSpec((1, 1, 2, D), lambda b, t: (b, t, 0, 0)),
        const_spec((3, D, D)),
        const_spec((1, D)),
        const_spec((D, Wp)),
        const_spec((1, Wp)),
    ]
    out_shapes = (jax.ShapeDtypeStruct((B, Tp, D), jnp.bfloat16),
                  jax.ShapeDtypeStruct((B, Tp, Wp), jnp.float32))
    out_specs = (pl.BlockSpec((1, tm, D), lambda b, t: (b, t, 0)),
                 pl.BlockSpec((1, tm, Wp), lambda b, t: (b, t, 0)))

    emb_p, head_p = pl.pallas_call(
        acm_kernel,
        out_shape=out_shapes,
        grid=(B, n_t),
        in_specs=in_specs,
        out_specs=out_specs,
        compiler_params=pltpu.CompilerParams(
            dimension_semantics=("parallel", "parallel"),
            vmem_limit_bytes=vmem_limit),
    )(x_pad, bnd, params["wconv"], params["bconv"], whead, bhead)

    # ---- plain-JAX glue (slices / softmaxes / top-k fuse cheaply in XLA) ----
    emb = emb_p[:, :T, :]                                     # (B, T, D) bf16
    head = head_p[:, :T, :]
    temp_att = jax.nn.softmax(head[..., 0:3], axis=-1)        # (B, T, 3)
    cas = head[..., 3:3 + C1]                                 # (B, T, C1) logits
    act_cas_sm = jax.nn.softmax(cas, axis=-1)

    inst_raw = cas * temp_att[..., 0:1]
    cont_raw = cas * temp_att[..., 1:2]
    back_raw = cas * temp_att[..., 2:3]
    inst_sm = jax.nn.softmax(inst_raw, axis=-1)
    cont_sm = jax.nn.softmax(cont_raw, axis=-1)
    back_sm = jax.nn.softmax(back_raw, axis=-1)

    k_inst = max(T // ins_topk_seg, 1)
    k_cont = max(T // con_topk_seg, 1)
    k_back = max(T // bak_topk_seg, 1)

    def topk_mean_cls(raw, k):
        # per-class top-k over time -> mean -> softmax over classes
        topv, _ = jax.lax.top_k(jnp.transpose(raw, (0, 2, 1)), k)    # (B, C1, k)
        return jax.nn.softmax(jnp.mean(topv, axis=-1), axis=-1)

    act_inst_cls = topk_mean_cls(inst_raw, k_inst)
    act_cont_cls = topk_mean_cls(cont_raw, k_cont)
    act_back_cls = topk_mean_cls(back_raw, k_back)

    def topk_feat(att_col, k):
        # top-k attention positions -> gather embedded features -> f32 mean
        _, idx = jax.lax.top_k(att_col, k)                           # (B, k)
        g = jnp.take_along_axis(emb, idx[..., None], axis=1)         # (B, k, D)
        return jnp.mean(g.astype(jnp.float32), axis=1)

    act_inst_feat = topk_feat(temp_att[:, :, 0], k_inst)
    act_cont_feat = topk_feat(temp_att[:, :, 1], k_cont)
    act_back_feat = topk_feat(temp_att[:, :, 2], k_back)

    return (act_inst_cls, act_cont_cls, act_back_cls,
            act_inst_feat, act_cont_feat, act_back_feat,
            temp_att, inst_sm, act_cas_sm, cont_sm, back_sm)


def init_params(key, feature_dim, num_cls_plus1):
    """PyTorch-shaped parameters, converted to kernel-friendly layouts."""
    D, C1 = feature_dim, num_cls_plus1
    ks = jax.random.split(key, 6)
    conv_w = jax.random.normal(ks[0], (D, D, 3), jnp.float32) * 0.05   # Conv1d (C_out, C_in, K)
    conv_b = jax.random.normal(ks[1], (D,), jnp.float32) * 0.05
    att_w = jax.random.normal(ks[2], (3, D, 1), jnp.float32) * 0.05    # Conv1d (3, C_in, 1)
    att_b = jax.random.normal(ks[3], (3,), jnp.float32) * 0.05
    cls_w = jax.random.normal(ks[4], (C1, D), jnp.float32) * 0.05      # Linear (out, in)
    cls_b = jax.random.normal(ks[5], (C1,), jnp.float32) * 0.05
    whead = jnp.concatenate([att_w[:, :, 0].T, cls_w.T], axis=1)       # (D, 3+C1)
    bhead = jnp.concatenate([att_b, cls_b])[None, :]                   # (1, 3+C1)
    return {
        "wconv": jnp.transpose(conv_w, (2, 1, 0)).astype(jnp.bfloat16),  # (K, C_in, C_out)
        "bconv": conv_b[None, :],                                        # (1, D) f32
        "whead": whead.astype(jnp.bfloat16),                             # (D, 3+C1) bf16
        "bhead": bhead,                                                  # (1, 3+C1) f32
    }


if __name__ == "__main__":
    B, T, D, C = 2, 16, 32, 4          # batch, temporal length, feature_dim, action classes
    key = jax.random.PRNGKey(0)
    kx, kp = jax.random.split(key)
    x = jax.random.normal(kx, (B, T, D), jnp.float32)
    params = init_params(kp, D, C + 1)

    fwd = jax.jit(acm_forward,
                  static_argnames=("ins_topk_seg", "con_topk_seg", "bak_topk_seg", "tm"))
    outs = fwd(x, params, ins_topk_seg=8, con_topk_seg=8, bak_topk_seg=8)
    jax.block_until_ready(outs)
    print("KERNEL_OK")
</pallas_src>

<mosaic_0001>
module attributes {stable_mosaic.version = 11 : i64} {
  func.func @acm_kernel(%arg0: i32, %arg1: i32, %arg2: memref<1x16x32xf32, #tpu.memory_space<vmem>>, %arg3: memref<1x1x2x32xf32, #tpu.memory_space<vmem>>, %arg4: memref<3x32x32xbf16, #tpu.memory_space<vmem>>, %arg5: memref<1x32xf32, #tpu.memory_space<vmem>>, %arg6: memref<32x128xbf16, #tpu.memory_space<vmem>>, %arg7: memref<1x128xf32, #tpu.memory_space<vmem>>, %arg8: memref<1x16x32xbf16, #tpu.memory_space<vmem>>, %arg9: memref<1x16x128xf32, #tpu.memory_space<vmem>>) attributes {dimension_semantics = [#tpu.dimension_semantics<parallel>, #tpu.dimension_semantics<parallel>], iteration_bounds = array<i64: 2, 1>, scalar_prefetch = 0 : i64, scratch_operands = 0 : i64, tpu.core_type = #tpu.core_type<tc>, window_params = [{transform_indices = @transform_0, window_bounds = array<i64: 1, 16, 32>}, {transform_indices = @transform_1, window_bounds = array<i64: 1, 1, 2, 32>}, {pipeline_mode = #tpu.pipeline_mode<synchronous>, transform_indices = @transform_2, window_bounds = array<i64: 3, 32, 32>}, {pipeline_mode = #tpu.pipeline_mode<synchronous>, transform_indices = @transform_3, window_bounds = array<i64: 1, 32>}, {pipeline_mode = #tpu.pipeline_mode<synchronous>, transform_indices = @transform_4, window_bounds = array<i64: 32, 128>}, {pipeline_mode = #tpu.pipeline_mode<synchronous>, transform_indices = @transform_5, window_bounds = array<i64: 1, 128>}, {transform_indices = @transform_6, window_bounds = array<i64: 1, 16, 32>}, {transform_indices = @transform_7, window_bounds = array<i64: 1, 16, 128>}]} {
    %c0 = arith.constant 0 : index
    %c0_0 = arith.constant 0 : index
    %c0_1 = arith.constant 0 : index
    %0 = vector.load %arg2[%c0, %c0_0, %c0_1] : memref<1x16x32xf32, #tpu.memory_space<vmem>>, vector<1x16x32xf32>
    %1 = vector.shape_cast %0 : vector<1x16x32xf32> to vector<16x32xf32>
    %2 = arith.truncf %1 : vector<16x32xf32> to vector<16x32xbf16>
    %c0_2 = arith.constant 0 : index
    %c0_3 = arith.constant 0 : index
    %c0_4 = arith.constant 0 : index
    %c0_5 = arith.constant 0 : index
    %3 = vector.load %arg3[%c0_2, %c0_3, %c0_4, %c0_5] : memref<1x1x2x32xf32, #tpu.memory_space<vmem>>, vector<1x1x2x32xf32>
    %4 = vector.shape_cast %3 : vector<1x1x2x32xf32> to vector<2x32xf32>
    %5 = arith.truncf %4 : vector<2x32xf32> to vector<2x32xbf16>
    %c0_6 = arith.constant 0 : index
    %c0_7 = arith.constant 0 : index
    %c0_8 = arith.constant 0 : index
    %6 = vector.load %arg4[%c0_6, %c0_7, %c0_8] : memref<3x32x32xbf16, #tpu.memory_space<vmem>>, vector<1x32x32xbf16>
    %7 = vector.shape_cast %6 : vector<1x32x32xbf16> to vector<32x32xbf16>
    %cst = arith.constant dense<0.000000e+00> : vector<16x32xf32>
    %8 = tpu.matmul %2, %7, %cst {dimension_numbers = #tpu.dot_dimension_numbers<[1], [0], [0], [1], [0, 0, 1, 1], [], []>} : vector<16x32xbf16>, vector<32x32xbf16>, vector<16x32xf32> -> vector<16x32xf32>
    %c1 = arith.constant 1 : index
    %c0_9 = arith.constant 0 : index
    %c0_10 = arith.constant 0 : index
    %9 = vector.load %arg4[%c1, %c0_9, %c0_10] : memref<3x32x32xbf16, #tpu.memory_space<vmem>>, vector<1x32x32xbf16>
    %10 = vector.shape_cast %9 : vector<1x32x32xbf16> to vector<32x32xbf16>
    %cst_11 = arith.constant dense<0.000000e+00> : vector<16x32xf32>
    %11 = tpu.matmul %2, %10, %cst_11 {dimension_numbers = #tpu.dot_dimension_numbers<[1], [0], [0], [1], [0, 0, 1, 1], [], []>} : vector<16x32xbf16>, vector<32x32xbf16>, vector<16x32xf32> -> vector<16x32xf32>
    %c2 = arith.constant 2 : index
    %c0_12 = arith.constant 0 : index
    %c0_13 = arith.constant 0 : index
    %12 = vector.load %arg4[%c2, %c0_12, %c0_13] : memref<3x32x32xbf16, #tpu.memory_space<vmem>>, vector<1x32x32xbf16>
    %13 = vector.shape_cast %12 : vector<1x32x32xbf16> to vector<32x32xbf16>
    %cst_14 = arith.constant dense<0.000000e+00> : vector<16x32xf32>
    %14 = tpu.matmul %2, %13, %cst_14 {dimension_numbers = #tpu.dot_dimension_numbers<[1], [0], [0], [1], [0, 0, 1, 1], [], []>} : vector<16x32xbf16>, vector<32x32xbf16>, vector<16x32xf32> -> vector<16x32xf32>
    %15 = vector.extract_strided_slice %5 {offsets = [0, 0], sizes = [1, 32], strides = [1, 1]} : vector<2x32xbf16> to vector<1x32xbf16>
    %c0_15 = arith.constant 0 : index
    %c0_16 = arith.constant 0 : index
    %c0_17 = arith.constant 0 : index
    %16 = vector.load %arg4[%c0_15, %c0_16, %c0_17] : memref<3x32x32xbf16, #tpu.memory_space<vmem>>, vector<1x32x32xbf16>
    %17 = vector.shape_cast %16 : vector<1x32x32xbf16> to vector<32x32xbf16>
    %cst_18 = arith.constant dense<0.000000e+00> : vector<1x32xf32>
    %18 = tpu.matmul %15, %17, %cst_18 {dimension_numbers = #tpu.dot_dimension_numbers<[1], [0], [0], [1], [0, 0, 1, 1], [], []>} : vector<1x32xbf16>, vector<32x32xbf16>, vector<1x32xf32> -> vector<1x32xf32>
    %19 = vector.extract_strided_slice %5 {offsets = [1, 0], sizes = [1, 32], strides = [1, 1]} : vector<2x32xbf16> to vector<1x32xbf16>
    %c2_19 = arith.constant 2 : index
    %c0_20 = arith.constant 0 : index
    %c0_21 = arith.constant 0 : index
    %20 = vector.load %arg4[%c2_19, %c0_20, %c0_21] : memref<3x32x32xbf16, #tpu.memory_space<vmem>>, vector<1x32x32xbf16>
    %21 = vector.shape_cast %20 : vector<1x32x32xbf16> to vector<32x32xbf16>
    %cst_22 = arith.constant dense<0.000000e+00> : vector<1x32xf32>
    %22 = tpu.matmul %19, %21, %cst_22 {dimension_numbers = #tpu.dot_dimension_numbers<[1], [0], [0], [1], [0, 0, 1, 1], [], []>} : vector<1x32xbf16>, vector<32x32xbf16>, vector<1x32xf32> -> vector<1x32xf32>
    %23 = tpu.iota {dimensions = array<i32: 0>} : vector<16x1xi32>
    %c0_i32 = arith.constant 0 : i32
    %24 = vector.broadcast %c0_i32 : i32 to vector<16x1xi32>
    %25 = arith.cmpi eq, %23, %24 : vector<16x1xi32>
    %c1_i32 = arith.constant 1 : i32
    %26 = tpu.dynamic_rotate %8 by %c1_i32 dim 0 : vector<16x32xf32>, i32 -> vector<16x32xf32>
    %27 = vector.shape_cast %25 : vector<16x1xi1> to vector<16x1xi1>
    %28 = vector.broadcast %27 : vector<16x1xi1> to vector<16x32xi1>
    %29 = vector.shape_cast %18 : vector<1x32xf32> to vector<1x32xf32>
    %30 = vector.broadcast %29 : vector<1x32xf32> to vector<16x32xf32>
    %31 = arith.select %28, %30, %26 : vector<16x32xi1>, vector<16x32xf32>
    %c15_i32 = arith.constant 15 : i32
    %32 = vector.broadcast %c15_i32 : i32 to vector<16x1xi32>
    %33 = arith.cmpi eq, %23, %32 : vector<16x1xi32>
    %c15_i32_23 = arith.constant 15 : i32
    %34 = tpu.dynamic_rotate %14 by %c15_i32_23 dim 0 : vector<16x32xf32>, i32 -> vector<16x32xf32>
    %35 = vector.shape_cast %33 : vector<16x1xi1> to vector<16x1xi1>
    %36 = vector.broadcast %35 : vector<16x1xi1> to vector<16x32xi1>
    %37 = vector.shape_cast %22 : vector<1x32xf32> to vector<1x32xf32>
    %38 = vector.broadcast %37 : vector<1x32xf32> to vector<16x32xf32>
    %39 = arith.select %36, %38, %34 : vector<16x32xi1>, vector<16x32xf32>
    %40 = arith.addf %31, %11 : vector<16x32xf32>
    %41 = arith.addf %40, %39 : vector<16x32xf32>
    %c0_24 = arith.constant 0 : index
    %c0_25 = arith.constant 0 : index
    %42 = vector.load %arg5[%c0_24, %c0_25] : memref<1x32xf32, #tpu.memory_space<vmem>>, vector<1x32xf32>
    %43 = vector.broadcast %42 : vector<1x32xf32> to vector<16x32xf32>
    %44 = arith.addf %41, %43 : vector<16x32xf32>
    %cst_26 = arith.constant 0.000000e+00 : f32
    %45 = vector.broadcast %cst_26 : f32 to vector<16x32xf32>
    %46 = arith.maximumf %44, %45 : vector<16x32xf32>
    %47 = arith.truncf %46 : vector<16x32xf32> to vector<16x32xbf16>
    %c0_27 = arith.constant 0 : index
    %c0_28 = arith.constant 0 : index
    %c0_29 = arith.constant 0 : index
    %48 = vector.load %arg8[%c0_27, %c0_28, %c0_29] : memref<1x16x32xbf16, #tpu.memory_space<vmem>>, vector<1x16x32xbf16>
    %49 = vector.shape_cast %48 : vector<1x16x32xbf16> to vector<16x32xbf16>
    %50 = vector.shape_cast %47 : vector<16x32xbf16> to vector<1x16x32xbf16>
    tpu.vector_store %arg8[%c0_27, %c0_28, %c0_29], %50 {strides = array<i32>} : memref<1x16x32xbf16, #tpu.memory_space<vmem>>, vector<1x16x32xbf16>,
    %c0_30 = arith.constant 0 : index
    %c0_31 = arith.constant 0 : index
    %51 = vector.load %arg6[%c0_30, %c0_31] : memref<32x128xbf16, #tpu.memory_space<vmem>>, vector<32x128xbf16>
    %cst_32 = arith.constant dense<0.000000e+00> : vector<16x128xf32>
    %52 = tpu.matmul %47, %51, %cst_32 {dimension_numbers = #tpu.dot_dimension_numbers<[1], [0], [0], [1], [0, 0, 1, 1], [], []>} : vector<16x32xbf16>, vector<32x128xbf16>, vector<16x128xf32> -> vector<16x128xf32>
    %c0_33 = arith.constant 0 : index
    %c0_34 = arith.constant 0 : index
    %53 = vector.load %arg7[%c0_33, %c0_34] : memref<1x128xf32, #tpu.memory_space<vmem>>, vector<1x128xf32>
    %54 = vector.broadcast %53 : vector<1x128xf32> to vector<16x128xf32>
    %55 = arith.addf %52, %54 : vector<16x128xf32>
    %c0_35 = arith.constant 0 : index
    %c0_36 = arith.constant 0 : index
    %c0_37 = arith.constant 0 : index
    %56 = vector.load %arg9[%c0_35, %c0_36, %c0_37] : memref<1x16x128xf32, #tpu.memory_space<vmem>>, vector<1x16x128xf32>
    %57 = vector.shape_cast %56 : vector<1x16x128xf32> to vector<16x128xf32>
    %58 = vector.shape_cast %55 : vector<16x128xf32> to vector<1x16x128xf32>
    tpu.vector_store %arg9[%c0_35, %c0_36, %c0_37], %58 {strides = array<i32>} : memref<1x16x128xf32, #tpu.memory_space<vmem>>, vector<1x16x128xf32>,
    return
  }
  func.func @transform_0(%arg0: i32, %arg1: i32) -> (i32, i32, i32) {
    %c0_i32 = arith.constant 0 : i32
    %c0_i32_0 = arith.constant 0 : i32
    return %arg0, %arg1, %c0_i32 : i32, i32, i32
  }
  func.func @transform_1(%arg0: i32, %arg1: i32) -> (i32, i32, i32, i32) {
    %c0_i32 = arith.constant 0 : i32
    %c0_i32_0 = arith.constant 0 : i32
    %c0_i32_1 = arith.constant 0 : i32
    return %arg0, %arg1, %c0_i32, %c0_i32_0 : i32, i32, i32, i32
  }
  func.func @transform_2(%arg0: i32, %arg1: i32) -> (i32, i32, i32) {
    %c0_i32 = arith.constant 0 : i32
    %c0_i32_0 = arith.constant 0 : i32
    %c0_i32_1 = arith.constant 0 : i32
    %c0_i32_2 = arith.constant 0 : i32
    return %c0_i32, %c0_i32_0, %c0_i32_1 : i32, i32, i32
  }
  func.func @transform_3(%arg0: i32, %arg1: i32) -> (i32, i32) {
    %c0_i32 = arith.constant 0 : i32
    %c0_i32_0 = arith.constant 0 : i32
    %c0_i32_1 = arith.constant 0 : i32
    return %c0_i32, %c0_i32_0 : i32, i32
  }
  func.func @transform_4(%arg0: i32, %arg1: i32) -> (i32, i32) {
    %c0_i32 = arith.constant 0 : i32
    %c0_i32_0 = arith.constant 0 : i32
    %c0_i32_1 = arith.constant 0 : i32
    return %c0_i32, %c0_i32_0 : i32, i32
  }
  func.func @transform_5(%arg0: i32, %arg1: i32) -> (i32, i32) {
    %c0_i32 = arith.constant 0 : i32
    %c0_i32_0 = arith.constant 0 : i32
    %c0_i32_1 = arith.constant 0 : i32
    return %c0_i32, %c0_i32_0 : i32, i32
  }
  func.func @transform_6(%arg0: i32, %arg1: i32) -> (i32, i32, i32) {
    %c0_i32 = arith.constant 0 : i32
    %c0_i32_0 = arith.constant 0 : i32
    return %arg0, %arg1, %c0_i32 : i32, i32, i32
  }
  func.func @transform_7(%arg0: i32, %arg1: i32) -> (i32, i32, i32) {
    %c0_i32 = arith.constant 0 : i32
    %c0_i32_0 = arith.constant 0 : i32
    return %arg0, %arg1, %c0_i32 : i32, i32, i32
  }
}

</mosaic_0001>

<llo_original>
// kernel: acm_forward.1
$region0: #{acm_forward.1}
  #allocation0 [shape = 'u32[]', space=smem, size = 0x4, offset = 0x4, fixed_abs, tag = 'smem constant byte address 0x4 - core index']
  #allocation1 [shape = 'u32[72,128]{1,0:T(1,128)}', space=vmem, size = 0x9000, scoped, tag = 'internal scratch']
  %s0 = inlined_call_operand.hbm [shape: f32[2,16,32], index: 0, kind: input, shape index: {}]
  %s1 = inlined_call_operand.vmem [shape: f32[2,1,2,32], index: 1, kind: input, shape index: {}]
  %s2 = inlined_call_operand.vmem [shape: bf16[3,32,32], index: 2, kind: input, shape index: {}]
  %s3 = inlined_call_operand.vmem [shape: f32[1,32], index: 3, kind: input, shape index: {}]
  %s4 = inlined_call_operand.vmem [shape: bf16[32,128], index: 4, kind: input, shape index: {}]
  %s5 = inlined_call_operand.vmem [shape: f32[1,128], index: 5, kind: input, shape index: {}]
  %s6 = inlined_call_operand.vmem [shape: bf16[2,16,32], index: 6, kind: output, shape index: {0}]
  %s7 = inlined_call_operand.vmem [shape: f32[2,16,128], index: 7, kind: output, shape index: {1}]
  %8 = xla_tuple %s6, %s7
  %s9 = sld [smem:[#allocation0]]
  $region69: #{acm_forward.1} parent=0
    _
  %s11 = ssub.s32 1, %s9
  %s12 = scalar_select 0, %s11, %s9
  $region1: #{acm_forward.1} parent=0
    #allocation2 [shape = 'u8[16384]{0}', space=vmem, size = 0x4000, scoped, tag = 'input window, operand 0']
    #allocation3 [shape = 's32[2]{0}', space=sflag, size = 0x8, scoped, tag = 'scoped memory for acm_forward.1']
    %13 = vsyncpa [#allocation3], 0
    %s14 = scalar_lea.sflag [#allocation3], 1
    %15 = vsyncpa %s14, 0
    loop: start=0, step=1, limit=4
    $region2: #{acm_forward.1} parent=1 // loop_pre_header
      _
    $region3: #{acm_forward.1} parent=1 // loop_header
      %s17 = sphi 0, %s21
      %p18 = scmp.ge.s32.totalorder %s17, 4
      %s24 = sphi 0, %s36
      %s25 = sphi 0, %s32
      %s26 = sphi 0, %s24
      %s27 = sphi 0, %s25
      %s28 = sphi 0, %s26
      %s29 = sphi 0, %s27
      %s41 = sphi 0, %s43
      %s44 = sphi 0, %s41
      %s45 = sphi 0, %s44
      %s61 = sphi 0, %s45
      %s69 = sphi 0, %s71
      %s72 = sphi 0, %s69
      %s73 = sphi 0, %s72
      %s89 = sphi 0, %s73
      %s93 = sphi 0, %s93
      %s95 = sphi 0, %s93
      %s96 = sphi 0, %s95
      %s110 = sphi 0, %s96
      %s114 = sphi 0, %s114
      %s116 = sphi 0, %s114
      %s117 = sphi 0, %s116
      %s131 = sphi 0, %s117
      %s135 = sphi 0, %s135
      %s137 = sphi 0, %s135
      %s138 = sphi 0, %s137
      %s152 = sphi 0, %s138
      %s156 = sphi 0, %s156
      %s158 = sphi 0, %s156
      %s159 = sphi 0, %s158
      %s173 = sphi 0, %s159
      %s181 = sphi 0, %s183
      %s184 = sphi 0, %s181
      %s185 = sphi 0, %s184
      %s201 = sphi 0, %s185
      %s209 = sphi 0, %s211
      %s212 = sphi 0, %s209
      %s213 = sphi 0, %s212
      %s229 = sphi 0, %s213
    $region4: #{acm_forward.1} parent=1 // loop_header_branch
      %20 = sbr.rel (%p18) target = $region8
    $region5: #{acm_forward.1} parent=1 // loop_body
      %s22 = ssub.s32 %s17, 1
      %s23 = ssub.s32 %s17, 2
      %s30 = sadd.s32 1, %s25
      %p31 = scmp.ge.s32.totalorder %s30, 1
      %s32 = scalar_select %p31, 0, %s30
      %s33 = sadd.s32 1, %s24
      %s34 = scalar_select %p31, %s33, %s24
      %p35 = scmp.ge.s32.totalorder %s34, 2
      %s36 = scalar_select %p35, 0, %s34
      %s37 = ssub.s32 %s24, %s36
      %s38 = ssub.s32 %s25, %s32
      %s39 = sor.u32 %s37, %s38
      %p40 = scmp.eq.s32.totalorder %s39, 0
      %s42 = sadd.s32 %s41, 1
      %s43 = scalar_select %p40, %s41, %s42
      %p46 = pneg %p40
      %p47 = scmp.eq.s32.totalorder %s17, 1
      %p48 = por %p46, %p47
      %p49 = scmp.ne.s32.totalorder %s41, %s44
      %p50 = scmp.eq.s32.totalorder %s17, 0
      %p51 = por %p49, %p50
      %p52 = scmp.ne.s32.totalorder %s41, %s44
      %p53 = scmp.eq.s32.totalorder %s22, 1
      %p54 = por %p52, %p53
      %p55 = scmp.ne.s32.totalorder %s44, %s45
      %p56 = scmp.eq.s32.totalorder %s22, 0
      %p57 = por %p55, %p56
      %p58 = scmp.ne.s32.totalorder %s44, %s45
      %p59 = scmp.eq.s32.totalorder %s23, 1
      %p60 = por %p58, %p59
      %p62 = scmp.ne.s32.totalorder %s45, %s61
      %p63 = scmp.eq.s32.totalorder %s23, 0
      %p64 = por %p62, %p63
      %s65 = ssub.s32 %s24, %s36
      %s66 = ssub.s32 %s25, %s32
      %s67 = sor.u32 %s65, %s66
      %p68 = scmp.eq.s32.totalorder %s67, 0
      %s70 = sadd.s32 %s69, 1
      %s71 = scalar_select %p68, %s69, %s70
      %p74 = pneg %p68
      %p75 = scmp.eq.s32.totalorder %s17, 1
      %p76 = por %p74, %p75
      %p77 = scmp.ne.s32.totalorder %s69, %s72
      %p78 = scmp.eq.s32.totalorder %s17, 0
      %p79 = por %p77, %p78
      %p80 = scmp.ne.s32.totalorder %s69, %s72
      %p81 = scmp.eq.s32.totalorder %s22, 1
      %p82 = por %p80, %p81
      %p83 = scmp.ne.s32.totalorder %s72, %s73
      %p84 = scmp.eq.s32.totalorder %s22, 0
      %p85 = por %p83, %p84
      %p86 = scmp.ne.s32.totalorder %s72, %s73
      %p87 = scmp.eq.s32.totalorder %s23, 1
      %p88 = por %p86, %p87
      %p90 = scmp.ne.s32.totalorder %s73, %s89
      %p91 = scmp.eq.s32.totalorder %s23, 0
      %p92 = por %p90, %p91
      %s94 = sadd.s32 %s93, 1
      %p97 = scmp.eq.s32.totalorder %s17, 1
      %p98 = scmp.ne.s32.totalorder %s93, %s95
      %p99 = scmp.eq.s32.totalorder %s17, 0
      %p100 = por %p98, %p99
      %p101 = scmp.ne.s32.totalorder %s93, %s95
      %p102 = scmp.eq.s32.totalorder %s22, 1
      %p103 = por %p101, %p102
      %p104 = scmp.ne.s32.totalorder %s95, %s96
      %p105 = scmp.eq.s32.totalorder %s22, 0
      %p106 = por %p104, %p105
      %p107 = scmp.ne.s32.totalorder %s95, %s96
      %p108 = scmp.eq.s32.totalorder %s23, 1
      %p109 = por %p107, %p108
      %p111 = scmp.ne.s32.totalorder %s96, %s110
      %p112 = scmp.eq.s32.totalorder %s23, 0
      %p113 = por %p111, %p112
      %s115 = sadd.s32 %s114, 1
      %p118 = scmp.eq.s32.totalorder %s17, 1
      %p119 = scmp.ne.s32.totalorder %s114, %s116
      %p120 = scmp.eq.s32.totalorder %s17, 0
      %p121 = por %p119, %p120
      %p122 = scmp.ne.s32.totalorder %s114, %s116
      %p123 = scmp.eq.s32.totalorder %s22, 1
      %p124 = por %p122, %p123
      %p125 = scmp.ne.s32.totalorder %s116, %s117
      %p126 = scmp.eq.s32.totalorder %s22, 0
      %p127 = por %p125, %p126
      %p128 = scmp.ne.s32.totalorder %s116, %s117
      %p129 = scmp.eq.s32.totalorder %s23, 1
      %p130 = por %p128, %p129
      %p132 = scmp.ne.s32.totalorder %s117, %s131
      %p133 = scmp.eq.s32.totalorder %s23, 0
      %p134 = por %p132, %p133
      %s136 = sadd.s32 %s135, 1
      %p139 = scmp.eq.s32.totalorder %s17, 1
      %p140 = scmp.ne.s32.totalorder %s135, %s137
      %p141 = scmp.eq.s32.totalorder %s17, 0
      %p142 = por %p140, %p141
      %p143 = scmp.ne.s32.totalorder %s135, %s137
      %p144 = scmp.eq.s32.totalorder %s22, 1
      %p145 = por %p143, %p144
      %p146 = scmp.ne.s32.totalorder %s137, %s138
      %p147 = scmp.eq.s32.totalorder %s22, 0
      %p148 = por %p146, %p147
      %p149 = scmp.ne.s32.totalorder %s137, %s138
      %p150 = scmp.eq.s32.totalorder %s23, 1
      %p151 = por %p149, %p150
      %p153 = scmp.ne.s32.totalorder %s138, %s152
      %p154 = scmp.eq.s32.totalorder %s23, 0
      %p155 = por %p153, %p154
      %s157 = sadd.s32 %s156, 1
      %p160 = scmp.eq.s32.totalorder %s17, 1
      %p161 = scmp.ne.s32.totalorder %s156, %s158
      %p162 = scmp.eq.s32.totalorder %s17, 0
      %p163 = por %p161, %p162
      %p164 = scmp.ne.s32.totalorder %s156, %s158
      %p165 = scmp.eq.s32.totalorder %s22, 1
      %p166 = por %p164, %p165
      %p167 = scmp.ne.s32.totalorder %s158, %s159
      %p168 = scmp.eq.s32.totalorder %s22, 0
      %p169 = por %p167, %p168
      %p170 = scmp.ne.s32.totalorder %s158, %s159
      %p171 = scmp.eq.s32.totalorder %s23, 1
      %p172 = por %p170, %p171
      %p174 = scmp.ne.s32.totalorder %s159, %s173
      %p175 = scmp.eq.s32.totalorder %s23, 0
      %p176 = por %p174, %p175
      %s177 = ssub.s32 %s24, %s36
      %s178 = ssub.s32 %s25, %s32
      %s179 = sor.u32 %s177, %s178
      %p180 = scmp.eq.s32.totalorder %s179, 0
      %s182 = sadd.s32 %s181, 1
      %s183 = scalar_select %p180, %s181, %s182
      %p186 = pneg %p180
      %p187 = scmp.eq.s32.totalorder %s17, 1
      %p188 = por %p186, %p187
      %p189 = scmp.ne.s32.totalorder %s181, %s184
      %p190 = scmp.eq.s32.totalorder %s17, 0
      %p191 = por %p189, %p190
      %p192 = scmp.ne.s32.totalorder %s181, %s184
      %p193 = scmp.eq.s32.totalorder %s22, 1
      %p194 = por %p192, %p193
      %p195 = scmp.ne.s32.totalorder %s184, %s185
      %p196 = scmp.eq.s32.totalorder %s22, 0
      %p197 = por %p195, %p196
      %p198 = scmp.ne.s32.totalorder %s184, %s185
      %p199 = scmp.eq.s32.totalorder %s23, 1
      %p200 = por %p198, %p199
      %p202 = scmp.ne.s32.totalorder %s185, %s201
      %p203 = scmp.eq.s32.totalorder %s23, 0
      %p204 = por %p202, %p203
      %s205 = ssub.s32 %s24, %s36
      %s206 = ssub.s32 %s25, %s32
      %s207 = sor.u32 %s205, %s206
      %p208 = scmp.eq.s32.totalorder %s207, 0
      %s210 = sadd.s32 %s209, 1
      %s211 = scalar_select %p208, %s209, %s210
      %p214 = pneg %p208
      %p215 = scmp.eq.s32.totalorder %s17, 1
      %p216 = por %p214, %p215
      %p217 = scmp.ne.s32.totalorder %s209, %s212
      %p218 = scmp.eq.s32.totalorder %s17, 0
      %p219 = por %p217, %p218
      %p220 = scmp.ne.s32.totalorder %s209, %s212
      %p221 = scmp.eq.s32.totalorder %s22, 1
      %p222 = por %p220, %p221
      %p223 = scmp.ne.s32.totalorder %s212, %s213
      %p224 = scmp.eq.s32.totalorder %s22, 0
      %p225 = por %p223, %p224
      %p226 = scmp.ne.s32.totalorder %s212, %s213
      %p227 = scmp.eq.s32.totalorder %s23, 1
      %p228 = por %p226, %p227
      %p230 = scmp.ne.s32.totalorder %s213, %s229
      %p231 = scmp.eq.s32.totalorder %s23, 0
      %p232 = por %p230, %p231
      %p233 = scmp.le.s32.totalorder 1, %s17
      %p234 = scmp.lt.s32.totalorder %s17, 3
      %p235 = pnand %p233, %p234
      %p236 = pneg %p235
      // Predicated region
      $region9: #{acm_forward.1} parent=5 // pred_check
        _
      $region10: #{acm_forward.1} parent=5 // pred_check_branch
        %238 = sbr.rel (%p235) target = $region12
      $region11: #{acm_forward.1} parent=5 // pred_region
        %s239 = ssub.s32 %s17, 1
        // Predicated region
        $region13: #{acm_forward.1} parent=11 // pred_check
          %p240 = pneg %p106
        $region14: #{acm_forward.1} parent=11 // pred_check_branch
          %242 = sbr.rel (%p240) target = $region16
        $region15: #{acm_forward.1} parent=11 // pred_region
          _
        $region16: #{acm_forward.1} parent=11 // pred_fallthru
          _
        // Predicated region
        $region17: #{acm_forward.1} parent=11 // pred_check
          %p243 = pneg %p127
        $region18: #{acm_forward.1} parent=11 // pred_check_branch
          %245 = sbr.rel (%p243) target = $region20
        $region19: #{acm_forward.1} parent=11 // pred_region
          _
        $region20: #{acm_forward.1} parent=11 // pred_fallthru
          _
        // Predicated region
        $region21: #{acm_forward.1} parent=11 // pred_check
          %p246 = pneg %p148
        $region22: #{acm_forward.1} parent=11 // pred_check_branch
          %248 = sbr.rel (%p246) target = $region24
        $region23: #{acm_forward.1} parent=11 // pred_region
          _
        $region24: #{acm_forward.1} parent=11 // pred_fallthru
          _
        // Predicated region
        $region25: #{acm_forward.1} parent=11 // pred_check
          %p249 = pneg %p169
        $region26: #{acm_forward.1} parent=11 // pred_check_branch
          %251 = sbr.rel (%p249) target = $region28
        $region27: #{acm_forward.1} parent=11 // pred_region
          _
        $region28: #{acm_forward.1} parent=11 // pred_fallthru
          _
      $region12: #{acm_forward.1} parent=5 // pred_fallthru
        _
      %p252 = scmp.lt.s32.totalorder %s17, 2
      // Predicated region
      $region29: #{acm_forward.1} parent=5 // pred_check
        %p253 = pneg %p252
      $region30: #{acm_forward.1} parent=5 // pred_check_branch
        %255 = sbr.rel (%p253) target = $region32
      $region31: #{acm_forward.1} parent=5 // pred_region
        // Predicated region
        $region33: #{acm_forward.1} parent=31 // pred_check
          %p256 = pneg %p51
        $region34: #{acm_forward.1} parent=31 // pred_check_branch
          %258 = sbr.rel (%p256) target = $region36
        $region35: #{acm_forward.1} parent=31 // pred_region
          %s259 = sand.u32 %s41, 1
          %s260 = scalar_lea.sflag [#allocation3], %s259
          %s261 = sand.u32 %s41, 1
          %s262 = smul.addr %s261, 16
          %s263 = scalar_lea.vmem [#allocation2], %s262
          %s264 = smul.u32 2, %s25
          %266 = vsyncadd %s260, 0
          %s267 = smul.addr %s24, 2
          %s268 = sadd.s32 %s264, %s267
          %s269 = smul.addr %s268, 8
          %s270 = scalar_lea.hbm %s0, %s269
          %s271 = sshll.u32 %s270, 4
          %s272 = int_to_ptr.hbm [resolvable:$true] %s271
          %s273 = sshll.u32 %s263, 4
          %s274 = int_to_ptr.vmem [resolvable:$true] %s273
          %279 = dma.hbm_to_vmem [thread:$0]  %s272, 256, %s274, %s260, 128, 128, 8
        $region36: #{acm_forward.1} parent=31 // pred_fallthru
          _
        // Predicated region
        $region37: #{acm_forward.1} parent=31 // pred_check
          %p280 = pneg %p79
        $region38: #{acm_forward.1} parent=31 // pred_check_branch
          %282 = sbr.rel (%p280) target = $region40
        $region39: #{acm_forward.1} parent=31 // pred_region
          %p283 = scmp.lt.s32.totalorder %s24, 1
          %s284 = scalar_select %p283, %s24, 1
          %p285 = scmp.lt.s32.totalorder %s25, 0
          %s286 = scalar_select %p285, %s25, 0
          %s287 = sadd.s32 %s286, %s284
          %s288 = smul.addr %s287, 2
          %s289 = scalar_lea.vmem %s1, %s288
        $region40: #{acm_forward.1} parent=31 // pred_fallthru
          _
      $region32: #{acm_forward.1} parent=5 // pred_fallthru
        _
      %p290 = scmp.le.s32.totalorder 1, %s17
      %p291 = scmp.lt.s32.totalorder %s17, 3
      %p292 = pnand %p290, %p291
      %p293 = pneg %p292
      // Predicated region
      $region41: #{acm_forward.1} parent=5 // pred_check
        _
      $region42: #{acm_forward.1} parent=5 // pred_check_branch
        %295 = sbr.rel (%p292) target = $region44
      $region43: #{acm_forward.1} parent=5 // pred_region
        %s296 = ssub.s32 %s17, 1
        %s297 = sand.u32 %s44, 1
        %s298 = scalar_lea.sflag [#allocation3], %s297
        %s299 = sand.u32 %s44, 1
        %s300 = smul.addr %s299, 16
        %s301 = scalar_lea.vmem [#allocation2], %s300
        // Predicated region
        $region45: #{acm_forward.1} parent=43 // pred_check
          %p302 = pneg %p57
        $region46: #{acm_forward.1} parent=43 // pred_check_branch
          %304 = sbr.rel (%p302) target = $region48
        $region47: #{acm_forward.1} parent=43 // pred_region
          %306 = dma.done %s298, 256
        $region48: #{acm_forward.1} parent=43 // pred_fallthru
          _
        %s307 = sand.u32 %s44, 1
        %s308 = scalar_lea.sflag [#allocation3], %s307
        %s309 = sand.u32 %s44, 1
        %s310 = smul.addr %s309, 16
        %s311 = scalar_lea.vmem [#allocation2], %s310
        %p312 = pneg %p57
        %p313 = pneg %p54
        %p314 = scmp.lt.s32.totalorder %s26, 1
        %s315 = scalar_select %p314, %s26, 1
        %p316 = scmp.lt.s32.totalorder %s27, 0
        %s317 = scalar_select %p316, %s27, 0
        %s318 = sadd.s32 %s317, %s315
        %s319 = smul.addr %s318, 2
        %s320 = scalar_lea.vmem %s1, %s319
        %p321 = pneg %p85
        %p322 = pneg %p82
        %p323 = pneg %p106
        %p324 = pneg %p103
        %p325 = pneg %p127
        %p326 = pneg %p124
        %p327 = pneg %p148
        %p328 = pneg %p145
        %p329 = pneg %p169
        %p330 = pneg %p166
        %p331 = pneg %p197
        %p332 = pneg %p194
        %s333 = smul.u32 2, %s27
        %p334 = scmp.lt.s32.totalorder %s26, 1
        %s335 = scalar_select %p334, %s26, 1
        %p336 = scmp.lt.s32.totalorder %s333, 1
        %s337 = scalar_select %p336, %s333, 1
        %s338 = smul.addr %s335, 2
        %s339 = sadd.s32 %s337, %s338
        %s340 = smul.addr %s339, 4
        %s341 = scalar_lea.vmem %s6, %s340
        %p342 = pneg %p225
        %p343 = pneg %p222
        %s344 = smul.u32 2, %s27
        %p345 = scmp.lt.s32.totalorder %s26, 1
        %s346 = scalar_select %p345, %s26, 1
        %p347 = scmp.lt.s32.totalorder %s344, 1
        %s348 = scalar_select %p347, %s344, 1
        %s349 = smul.addr %s346, 2
        %s350 = sadd.s32 %s348, %s349
        %s351 = smul.addr %s350, 8
        %s352 = scalar_lea.vmem %s7, %s351
        %s353 = smul.u32 2, %s27
        %p354 = scmp.lt.s32.totalorder %s26, 1
        %s355 = scalar_select %p354, %s26, 1
        %p356 = scmp.lt.s32.totalorder %s27, 0
        %s357 = scalar_select %p356, %s27, 0
        %s358 = sadd.s32 %s357, %s355
        %s359 = smul.addr %s358, 2
        %s360 = scalar_lea.vmem %s1, %s359
        %s361 = smul.u32 2, %s27
        %p362 = scmp.lt.s32.totalorder %s26, 1
        %s363 = scalar_select %p362, %s26, 1
        %p364 = scmp.lt.s32.totalorder %s361, 1
        %s365 = scalar_select %p364, %s361, 1
        %s366 = smul.addr %s363, 2
        %s367 = sadd.s32 %s365, %s366
        %s368 = smul.addr %s367, 4
        %s369 = scalar_lea.vmem %s6, %s368
        %s370 = smul.u32 2, %s27
        %s371 = smul.u32 2, %s27
        %p372 = scmp.lt.s32.totalorder %s26, 1
        %s373 = scalar_select %p372, %s26, 1
        %p374 = scmp.lt.s32.totalorder %s371, 1
        %s375 = scalar_select %p374, %s371, 1
        %s376 = smul.addr %s373, 2
        %s377 = sadd.s32 %s375, %s376
        %s378 = smul.addr %s377, 8
        %s379 = scalar_lea.vmem %s7, %s378
        %s380 = smul.u32 2, %s27
        %v382 = vld [vmem:[%s301] sm:$0xff]
        %v383 = vld [vmem:[%s301 + $0x8] sm:$0xff]
        %v384 = vpack.c.bf16 %v383, %v382
        %v385 = vld [vmem:[%s360] sm:$0x3]
        %v386 = vpack.c.bf16 %v385, %v385
        %v387 = vld [vmem:[%s2] sm:$0xf]
        %v388 = vld [vmem:[%s2 + $0x4] sm:$0xf]
        %v389 = vld [vmem:[%s2 + $0x8] sm:$0xf]
        %v390 = vld [vmem:[%s2 + $0xc] sm:$0xf]
        %v395 = vunpack.c.l.b16 %v387
        %v396 = vunpack.c.l.b16 %v388
        %v397 = vunpack.c.l.b16 %v389
        %v398 = vunpack.c.l.b16 %v390
        %v399 = vpack.c.b16 %v396, %v395
        %v400 = vpack.c.b16 %v398, %v397
        %vm403 = vcmask 261120
        %v405 = vsel %vm403, %v384, 0
        %407 = vmatpush.bf16.msra.mxu0 0
        %408 = vmatpush.bf16.msra.mxu0 0
        %409 = vmatpush.bf16.msra.mxu0 0
        %410 = vmatpush.bf16.msra.mxu0 0
        %411 = vmatpush.bf16.msra.mxu0 0
        %412 = vmatpush.bf16.msra.mxu0 0
        %413 = vmatpush.bf16.msra.mxu0 %v400
        %414 = vmatpush.bf16.msra.mxu0 %v399
        %415 = vmatmul.bf16.gmra.mxu0 %v405
        %v416 = vpop.f32.mrf.mxu0
        %v417 = vadd.f32 0.0, %v416
        %v418 = vpop.f32.mrf.mxu0
        %v419 = vadd.f32 0.0, %v418
        %420 = vdwg.mxu0
        %s421 = scalar_lea.vmem %s2, 16
        %v422 = vld [vmem:[%s421] sm:$0xf]
        %v423 = vld [vmem:[%s421 + $0x4] sm:$0xf]
        %v424 = vld [vmem:[%s421 + $0x8] sm:$0xf]
        %v425 = vld [vmem:[%s421 + $0xc] sm:$0xf]
        %v430 = vunpack.c.l.b16 %v422
        %v431 = vunpack.c.l.b16 %v423
        %v432 = vunpack.c.l.b16 %v424
        %v433 = vunpack.c.l.b16 %v425
        %v434 = vpack.c.b16 %v431, %v430
        %v435 = vpack.c.b16 %v433, %v432
        %438 = vmatpush.bf16.msra.mxu0 0
        %439 = vmatpush.bf16.msra.mxu0 0
        %440 = vmatpush.bf16.msra.mxu0 0
        %441 = vmatpush.bf16.msra.mxu0 0
        %442 = vmatpush.bf16.msra.mxu0 0
        %443 = vmatpush.bf16.msra.mxu0 0
        %444 = vmatpush.bf16.msra.mxu0 %v435
        %445 = vmatpush.bf16.msra.mxu0 %v434
        %446 = vmatmul.bf16.gmra.mxu0 %v405
        %v447 = vpop.f32.mrf.mxu0
        %v448 = vadd.f32 0.0, %v447
        %v449 = vpop.f32.mrf.mxu0
        %v450 = vadd.f32 0.0, %v449
        %451 = vdwg.mxu0
        %s452 = scalar_lea.vmem %s2, 32
        %v453 = vld [vmem:[%s452] sm:$0xf]
        %v454 = vld [vmem:[%s452 + $0x4] sm:$0xf]
        %v455 = vld [vmem:[%s452 + $0x8] sm:$0xf]
        %v456 = vld [vmem:[%s452 + $0xc] sm:$0xf]
        %v461 = vunpack.c.l.b16 %v453
        %v462 = vunpack.c.l.b16 %v454
        %v463 = vunpack.c.l.b16 %v455
        %v464 = vunpack.c.l.b16 %v456
        %v465 = vpack.c.b16 %v462, %v461
        %v466 = vpack.c.b16 %v464, %v463
        %469 = vmatpush.bf16.msra.mxu0 0
        %470 = vmatpush.bf16.msra.mxu0 0
        %471 = vmatpush.bf16.msra.mxu0 0
        %472 = vmatpush.bf16.msra.mxu0 0
        %473 = vmatpush.bf16.msra.mxu0 0
        %474 = vmatpush.bf16.msra.mxu0 0
        %475 = vmatpush.bf16.msra.mxu0 %v466
        %476 = vmatpush.bf16.msra.mxu0 %v465
        %477 = vmatmul.bf16.gmra.mxu0 %v405
        %v478 = vpop.f32.mrf.mxu0
        %v479 = vadd.f32 0.0, %v478
        %v480 = vpop.f32.mrf.mxu0
        %v481 = vadd.f32 0.0, %v480
        %482 = vdwg.mxu0
        %v484 = vsel %vm403, %v386, 0
        %486 = vmatpush.bf16.msra.mxu0 0
        %487 = vmatpush.bf16.msra.mxu0 0
        %488 = vmatpush.bf16.msra.mxu0 0
        %489 = vmatpush.bf16.msra.mxu0 0
        %490 = vmatpush.bf16.msra.mxu0 0
        %491 = vmatpush.bf16.msra.mxu0 0
        %492 = vmatpush.bf16.msra.mxu0 %v400
        %493 = vmatpush.bf16.msra.mxu0 %v399
        %494 = vmatmul.bf16.gmra.mxu0 %v484
        %v495 = vpop.f32.mrf.mxu0
        %v496 = vadd.f32 0.0, %v495
        %v497 = vpop.f32.mrf.mxu0
        %498 = vdwg.mxu0
        %v500 = vunpack.c.l.b16 %v386
        %v501 = vpack.c.b16 %v500, %v500
        %v503 = vshrl.u32 %v501, 16
        %v506 = vsel %vm403, %v503, 0
        %508 = vmatpush.bf16.msra.mxu0 0
        %509 = vmatpush.bf16.msra.mxu0 0
        %510 = vmatpush.bf16.msra.mxu0 0
        %511 = vmatpush.bf16.msra.mxu0 0
        %512 = vmatpush.bf16.msra.mxu0 0
        %513 = vmatpush.bf16.msra.mxu0 0
        %514 = vmatpush.bf16.msra.mxu0 %v466
        %515 = vmatpush.bf16.msra.mxu0 %v465
        %516 = vmatmul.bf16.gmra.mxu0 %v506
        %v517 = vpop.f32.mrf.mxu0
        %v518 = vadd.f32 0.0, %v517
        %v519 = vpop.f32.mrf.mxu0
        %520 = vdwg.mxu0
        %v521 = vlaneseq
        %v522 = vshrl.u32 %v521, 7
        %v523 = vadd.s32 %v522, 8
        %vm524 = vcmp.eq.s32.totalorder %v522, 0
        %vm525 = vcmp.eq.s32.totalorder %v523, 0
        %v526 = vrot.slane %v417, 7
        %v527 = vrot.slane %v419, 7
        %vm528 = vcmp.lt.s32.totalorder %v522, 1
        %v529 = vsel %vm528, %v526, %v527
        %v530 = vsel %vm528, %v527, %v526
        %v531 = vsel %vm524, 1, 0
        %v532 = vsel %vm525, 1, 0
        %vm533 = vcmp.eq.s32.totalorder %v531, 1
        %vm534 = vcmp.eq.s32.totalorder %v532, 1
        %v535 = vperm.slane %v496, 0
        %v536 = vsel %vm533, %v535, %v530
        %v537 = vsel %vm534, %v535, %v529
        %vm538 = vcmp.eq.s32.totalorder %v522, 15
        %vm539 = vcmp.eq.s32.totalorder %v523, 15
        %v540 = vrot.slane %v479, 1
        %v541 = vrot.slane %v481, 1
        %vm542 = vcmp.lt.s32.totalorder %v522, 7
        %v543 = vsel %vm542, %v540, %v541
        %v544 = vsel %vm542, %v541, %v540
        %v545 = vsel %vm538, 1, 0
        %v546 = vsel %vm539, 1, 0
        %vm547 = vcmp.eq.s32.totalorder %v545, 1
        %vm548 = vcmp.eq.s32.totalorder %v546, 1
        %v549 = vperm.slane %v518, 0
        %v550 = vsel %vm547, %v549, %v543
        %v551 = vsel %vm548, %v549, %v544
        %v552 = vadd.f32 %v536, %v448
        %v553 = vadd.f32 %v537, %v450
        %v554 = vadd.f32 %v552, %v550
        %v555 = vadd.f32 %v553, %v551
        %v556 = vld [vmem:[%s3] sm:$0x1]
        %v558 = vperm.slane %v556, 0
        %v560 = vadd.f32 %v554, %v558
        %v561 = vadd.f32 %v555, %v558
        %v562 = vmax.f32 %v560, 0.0
        %v563 = vmax.f32 %v561, 0.0
        %v564 = vpack.c.bf16 %v562, %v562
        %v565 = vpack.c.bf16 %v563, %v563
        %vm566 = vcmask 257024
        %567 = vst.msk [vmem:[%s369] sm:$0xf] %vm566, %v564
        %568 = vst.msk [vmem:[%s369 + $0x4] sm:$0xf] %vm566, %v565
        %v569 = vld [vmem:[%s4] sm:$0xf]
        %v570 = vld [vmem:[%s4 + $0x4] sm:$0xf]
        %v571 = vld [vmem:[%s4 + $0x8] sm:$0xf]
        %v572 = vld [vmem:[%s4 + $0xc] sm:$0xf]
        %v573 = vld [vmem:[%s5] sm:$0x1]
        %v575 = vperm.slane %v573, 0
        %v579 = vunpack.c.l.b16 %v564
        %v580 = vunpack.c.l.b16 %v565
        %v581 = vpack.c.b16 %v580, %v579
        %v586 = vunpack.c.l.b16 %v569
        %v587 = vunpack.c.l.b16 %v570
        %v588 = vunpack.c.l.b16 %v571
        %v589 = vunpack.c.l.b16 %v572
        %v590 = vpack.c.b16 %v587, %v586
        %v591 = vpack.c.b16 %v589, %v588
        %v595 = vsel %vm403, %v581, 0
        %597 = vmatpush.bf16.msra.mxu0 0
        %598 = vmatpush.bf16.msra.mxu0 0
        %599 = vmatpush.bf16.msra.mxu0 0
        %600 = vmatpush.bf16.msra.mxu0 0
        %601 = vmatpush.bf16.msra.mxu0 0
        %602 = vmatpush.bf16.msra.mxu0 0
        %603 = vmatpush.bf16.msra.mxu0 %v591
        %604 = vmatpush.bf16.msra.mxu0 %v590
        %605 = vmatmul.bf16.gmra.mxu0 %v595
        %v606 = vpop.f32.mrf.mxu0
        %v607 = vadd.f32 %v575, %v606
        %v608 = vpop.f32.mrf.mxu0
        %v609 = vadd.f32 %v575, %v608
        %610 = vdwg.mxu0
        %611 = vst [vmem:[%s379] sm:$0xff] %v607
        %612 = vst [vmem:[%s379 + $0x8] sm:$0xff] %v609
        %s613 = smul.u32 2, %s27
        %p614 = scmp.lt.s32.totalorder %s26, 1
        %s615 = scalar_select %p614, %s26, 1
        %p616 = scmp.lt.s32.totalorder %s613, 1
        %s617 = scalar_select %p616, %s613, 1
        %s618 = smul.addr %s615, 2
        %s619 = sadd.s32 %s617, %s618
        %s620 = smul.addr %s619, 4
        %s621 = scalar_lea.vmem %s6, %s620
        %s622 = smul.u32 2, %s27
        %p623 = scmp.lt.s32.totalorder %s26, 1
        %s624 = scalar_select %p623, %s26, 1
        %p625 = scmp.lt.s32.totalorder %s622, 1
        %s626 = scalar_select %p625, %s622, 1
        %s627 = smul.addr %s624, 2
        %s628 = sadd.s32 %s626, %s627
        %s629 = smul.addr %s628, 8
        %s630 = scalar_lea.vmem %s7, %s629
        // Predicated region
        $region49: #{acm_forward.1} parent=43 // pred_check
          %p631 = pneg %p194
        $region50: #{acm_forward.1} parent=43 // pred_check_branch
          %633 = sbr.rel (%p631) target = $region52
        $region51: #{acm_forward.1} parent=43 // pred_region
          %s634 = smul.u32 2, %s27
        $region52: #{acm_forward.1} parent=43 // pred_fallthru
          _
        // Predicated region
        $region53: #{acm_forward.1} parent=43 // pred_check
          %p635 = pneg %p222
        $region54: #{acm_forward.1} parent=43 // pred_check_branch
          %637 = sbr.rel (%p635) target = $region56
        $region55: #{acm_forward.1} parent=43 // pred_region
          %s638 = smul.u32 2, %s27
        $region56: #{acm_forward.1} parent=43 // pred_fallthru
          _
      $region44: #{acm_forward.1} parent=5 // pred_fallthru
        _
      %p639 = scmp.le.s32.totalorder 2, %s17
      // Predicated region
      $region57: #{acm_forward.1} parent=5 // pred_check
        %p640 = pneg %p639
      $region58: #{acm_forward.1} parent=5 // pred_check_branch
        %642 = sbr.rel (%p640) target = $region60
      $region59: #{acm_forward.1} parent=5 // pred_region
        %s643 = ssub.s32 %s17, 2
        // Predicated region
        $region61: #{acm_forward.1} parent=59 // pred_check
          %p644 = pneg %p200
        $region62: #{acm_forward.1} parent=59 // pred_check_branch
          %646 = sbr.rel (%p644) target = $region64
        $region63: #{acm_forward.1} parent=59 // pred_region
          %s647 = smul.u32 2, %s29
          %p648 = scmp.lt.s32.totalorder %s28, 1
          %s649 = scalar_select %p648, %s28, 1
          %p650 = scmp.lt.s32.totalorder %s647, 1
          %s651 = scalar_select %p650, %s647, 1
          %s652 = smul.addr %s649, 2
          %s653 = sadd.s32 %s651, %s652
          %s654 = smul.addr %s653, 4
          %s655 = scalar_lea.vmem %s6, %s654
        $region64: #{acm_forward.1} parent=59 // pred_fallthru
          _
        // Predicated region
        $region65: #{acm_forward.1} parent=59 // pred_check
          %p656 = pneg %p228
        $region66: #{acm_forward.1} parent=59 // pred_check_branch
          %658 = sbr.rel (%p656) target = $region68
        $region67: #{acm_forward.1} parent=59 // pred_region
          %s659 = smul.u32 2, %s29
          %p660 = scmp.lt.s32.totalorder %s28, 1
          %s661 = scalar_select %p660, %s28, 1
          %p662 = scmp.lt.s32.totalorder %s659, 1
          %s663 = scalar_select %p662, %s659, 1
          %s664 = smul.addr %s661, 2
          %s665 = sadd.s32 %s663, %s664
          %s666 = smul.addr %s665, 8
          %s667 = scalar_lea.vmem %s7, %s666
        $region68: #{acm_forward.1} parent=59 // pred_fallthru
          _
      $region60: #{acm_forward.1} parent=5 // pred_fallthru
        _
    $region6: #{acm_forward.1} parent=1 // loop_footer
      %s21 = sadd.s32 1, %s17
    $region7: #{acm_forward.1} parent=1 // loop_footer_branch
      %16 = sbr.rel target = $region3
    $region8: #{acm_forward.1} parent=1 // loop_exit
      _
    %668 = vsyncpa [#allocation3], 1
    %s669 = scalar_lea.sflag [#allocation3], 1
    %670 = vsyncpa %s669, 1

</llo_original>
